<compile_context>
chip_gen: v6e
topology: v6e:2x2x1
jax: 0.10.0
libtpu: 0.0.40
codegen_flags: <defaults>
</compile_context>

<pallas_src>
import jax
import jax.numpy as jnp
from jax.experimental import pallas as pl
from jax.experimental.pallas import tpu as pltpu


# ---------------------------------------------------------------------------
# Kernel
# ---------------------------------------------------------------------------
def _network_kernel(obs_ref, act_ref, w1o_ref, w1a_ref, w2_ref, small_ref, out_ref):
    """One batch tile of the 3-layer MLP.

    obs_ref   : (TB, obs_dim)     activations, batch on sublanes (any float dtype)
    act_ref   : (TB, act_dim)
    w1o_ref   : (obs_dim, H_PAD)  layer-1 weight rows matching obs features   (bf16)
    w1a_ref   : (act_dim, H_PAD)  layer-1 weight rows matching action features (bf16)
    w2_ref    : (H_PAD, H_PAD)    (bf16)
    small_ref : (8, H_PAD) f32    row0=b1, row1=b2, row2=w3 (as a row), [3,0]=b3
    out_ref   : (1, TB) f32       lane-dense output (batch mapped to lanes)
    """
    mm_dtype = w1o_ref.dtype                       # bf16 (or f32 if packed that way)

    b1 = small_ref[0:1, :]                         # (1, H_PAD) f32
    b2 = small_ref[1:2, :]                         # (1, H_PAD) f32
    w3_row = small_ref[2:3, :].astype(mm_dtype)    # (1, H_PAD)
    b3 = small_ref[3:4, 0:1]                       # (1, 1) f32

    # In-kernel cast of the activation tile to the matmul dtype (cheap VPU pack); the
    # wrapper never touches the input arrays, so no extra HBM pass.
    obs_mm = obs_ref[...].astype(mm_dtype)
    act_mm = act_ref[...].astype(mm_dtype)

    # Layer 1 (+ relu): split matmul replaces torch.cat([obs, action], -1) @ W1.
    h1 = jnp.dot(obs_mm, w1o_ref[...], preferred_element_type=jnp.float32)
    h1 = h1 + jnp.dot(act_mm, w1a_ref[...], preferred_element_type=jnp.float32)
    h1 = jnp.maximum(h1 + b1, 0.0)                 # (TB, H_PAD) f32
    h1 = h1.astype(mm_dtype)

    # Layer 2 (+ relu)
    h2 = jnp.dot(h1, w2_ref[...], preferred_element_type=jnp.float32)
    h2 = jnp.maximum(h2 + b2, 0.0)                 # (TB, H_PAD) f32
    h2 = h2.astype(mm_dtype)

    # Layer 3: contract the (1,H) w3 row against h2's feature (minor) dim on the MXU so
    # the result is already lane-dense (1, TB) -> unmasked vst to the (1, B) output slab.
    # (Per the perf review: if a per-step vxpose of h2 ever shows in the bundle dump on a
    #  given chip gen, restructure to the transposed-feed MXU path; here we keep the
    #  dot_general form, which is what pl.dot(..., trans_b=True) lowers to as well.)
    z = jax.lax.dot_general(
        w3_row, h2, (((1,), (1,)), ((), ())),
        preferred_element_type=jnp.float32)        # (1, TB) f32
    z = z + b3

    # softplus, matching F.softplus(beta=1, threshold=20)
    sp = jnp.log1p(jnp.exp(jnp.minimum(z, 20.0)))
    out_ref[...] = jnp.where(z > 20.0, z, sp)


# ---------------------------------------------------------------------------
# Tile selection
# ---------------------------------------------------------------------------
def _choose_block_b(batch, block_b, max_block_b):
    """Pick the batch tile: big tiles to amortize per-step overhead, >=2 steps for v7x."""
    if block_b is not None:
        return min(block_b, batch)
    if batch <= 256:
        # Single full-array block: cheapest on 1-TC chips, no divisibility constraints.
        return batch
    # Aim for >= 2 grid steps (so "parallel" can use both v7x TensorCores) but cap the
    # tile so intermediates stay comfortably inside scoped VMEM on every generation.
    tb = min(max_block_b, pl.cdiv(batch, 2))
    return ((tb + 127) // 128) * 128


# ---------------------------------------------------------------------------
# Wrapper
# ---------------------------------------------------------------------------
def network_forward(obs, action, packed_params, *, block_b=None, max_block_b=4096):
    """Batched forward pass.

    Returns a flat (B,) f32 vector (same values as Network.forward(obs, action)[:, 0]).
    The lane-dense (1, B) kernel output is returned as a free (B,) view; callers that
    need the PyTorch (B, 1) shape can add `[:, None]` at their own relayout cost.
    """
    w1o, w1a, w2, small = packed_params

    B, obs_dim = obs.shape
    act_dim = action.shape[1]
    h_pad = w2.shape[0]

    tb = _choose_block_b(B, block_b, max_block_b)
    grid_b = pl.cdiv(B, tb)
    if grid_b > 1:
        assert tb % 128 == 0, "multi-block grids need a lane-aligned (multiple-of-128) tile"

    out = pl.pallas_call(
        _network_kernel,
        out_shape=jax.ShapeDtypeStruct((1, B), jnp.float32),
        grid=(grid_b,),
        in_specs=[
            pl.BlockSpec((tb, obs_dim), lambda i: (i, 0)),    # obs tile (ragged last block OK)
            pl.BlockSpec((tb, act_dim), lambda i: (i, 0)),    # action tile
            pl.BlockSpec((obs_dim, h_pad), lambda i: (0, 0)), # w1 (obs rows), VMEM-resident
            pl.BlockSpec((act_dim, h_pad), lambda i: (0, 0)), # w1 (act rows), VMEM-resident
            pl.BlockSpec((h_pad, h_pad), lambda i: (0, 0)),   # w2, VMEM-resident
            pl.BlockSpec((8, h_pad), lambda i: (0, 0)),       # packed b1/b2/w3/b3
        ],
        out_specs=pl.BlockSpec((1, tb), lambda i: (0, i)),    # lane-dense slab
        compiler_params=pltpu.CompilerParams(
            dimension_semantics=("parallel",),                # v7x: shard batch over 2 TCs
            vmem_limit_bytes=32 * 1024 * 1024),
    )(obs, action, w1o, w1a, w2, small)

    return out.reshape(B)


# ---------------------------------------------------------------------------
# Parameters
# ---------------------------------------------------------------------------
def init_params(key, obs_dim, action_dim, hidden_dim):
    """Raw parameters with the same shapes as the nn.Linear layers (stored as (in, out))."""
    d_in = obs_dim + action_dim
    k1, k2, k3, k4, k5, k6 = jax.random.split(key, 6)
    w1 = jax.random.normal(k1, (d_in, hidden_dim), jnp.float32) * 0.1
    b1 = jax.random.normal(k2, (hidden_dim,), jnp.float32) * 0.1
    w2 = jax.random.normal(k3, (hidden_dim, hidden_dim), jnp.float32) * 0.1
    b2 = jax.random.normal(k4, (hidden_dim,), jnp.float32) * 0.1
    w3 = jax.random.normal(k5, (hidden_dim, 1), jnp.float32) * 0.1
    b3 = jax.random.normal(k6, (1,), jnp.float32) * 0.1
    return (w1, b1, w2, b2, w3, b3)


def pack_params(raw, obs_dim, hidden_dim, weights_dtype=jnp.bfloat16):
    """Pad hidden dim to a lane-full multiple of 128, cast weights to the MXU dtype, and
    pack the small params (b1, b2, w3-row, b3) into one (8, H_PAD) f32 array."""
    w1, b1, w2, b2, w3, b3 = raw
    h = hidden_dim
    h_pad = max(128, ((h + 127) // 128) * 128)
    d_in = w1.shape[0]

    w1p = jnp.zeros((d_in, h_pad), jnp.float32).at[:, :h].set(w1)
    w1o = w1p[:obs_dim].astype(weights_dtype)          # (obs_dim, h_pad)
    w1a = w1p[obs_dim:].astype(weights_dtype)          # (act_dim, h_pad)
    w2p = jnp.zeros((h_pad, h_pad), jnp.float32).at[:h, :h].set(w2).astype(weights_dtype)

    small = jnp.zeros((8, h_pad), jnp.float32)
    small = small.at[0, :h].set(b1)                    # b1
    small = small.at[1, :h].set(b2)                    # b2
    small = small.at[2, :h].set(w3[:, 0])              # w3 as a lane row (cast in kernel)
    small = small.at[3, 0].set(b3[0])                  # b3
    return (w1o, w1a, w2p, small)


# ---------------------------------------------------------------------------
# References (for correctness checking only)
# ---------------------------------------------------------------------------
def reference_forward(obs, action, raw):
    """Pure-JAX f32 reference, identical math to the PyTorch module."""
    w1, b1, w2, b2, w3, b3 = raw
    oa = jnp.concatenate([obs, action], axis=-1)
    h1 = jnp.maximum(oa @ w1 + b1, 0.0)
    h2 = jnp.maximum(h1 @ w2 + b2, 0.0)
    z = h2 @ w3 + b3
    return jnp.where(z > 20.0, z, jnp.log1p(jnp.exp(jnp.minimum(z, 20.0))))


def reference_forward_bf16(obs, action, raw):
    """Reference mirroring the kernel's bf16 operand rounding (f32 accumulation)."""
    w1, b1, w2, b2, w3, b3 = raw
    bf = lambda x: x.astype(jnp.bfloat16).astype(jnp.float32)
    oa = jnp.concatenate([bf(obs), bf(action)], axis=-1)
    h1 = bf(jnp.maximum(oa @ bf(w1) + b1, 0.0))
    h2 = bf(jnp.maximum(h1 @ bf(w2) + b2, 0.0))
    z = h2 @ bf(w3) + b3
    return jnp.where(z > 20.0, z, jnp.log1p(jnp.exp(jnp.minimum(z, 20.0))))


# ---------------------------------------------------------------------------
# Demo / self-check
# ---------------------------------------------------------------------------
if __name__ == "__main__":
    obs_dim, action_dim, hidden_dim = 18, 5, 32   # MPE simple_spread sizes, hidden=32

    key = jax.random.PRNGKey(0)
    k_param, k_o1, k_a1, k_o2, k_a2 = jax.random.split(key, 5)

    raw = init_params(k_param, obs_dim, action_dim, hidden_dim)
    packed = pack_params(raw, obs_dim, hidden_dim)

    # Case 1: batch auto-splits into a 2-step grid (256 + ragged 44), no wrapper padding.
    B1 = 300
    obs1 = jax.random.normal(k_o1, (B1, obs_dim), jnp.float32)
    act1 = jax.random.normal(k_a1, (B1, action_dim), jnp.float32)
    q1 = jax.block_until_ready(network_forward(obs1, act1, packed))
    assert q1.shape == (B1,)
    ref1_q = reference_forward_bf16(obs1, act1, raw).reshape(-1)
    ref1_f = reference_forward(obs1, act1, raw).reshape(-1)
    assert jnp.allclose(q1, ref1_q, atol=2e-4, rtol=2e-4)   # exact up to accumulation order
    assert jnp.allclose(q1, ref1_f, atol=5e-2, rtol=5e-2)   # bf16-operand fidelity vs f32

    # Case 2: tiny batch -> single full-array block (grid of 1).
    B2 = 64
    obs2 = jax.random.normal(k_o2, (B2, obs_dim), jnp.float32)
    act2 = jax.random.normal(k_a2, (B2, action_dim), jnp.float32)
    q2 = jax.block_until_ready(network_forward(obs2, act2, packed))
    assert q2.shape == (B2,)
    ref2_q = reference_forward_bf16(obs2, act2, raw).reshape(-1)
    ref2_f = reference_forward(obs2, act2, raw).reshape(-1)
    assert jnp.allclose(q2, ref2_q, atol=2e-4, rtol=2e-4)
    assert jnp.allclose(q2, ref2_f, atol=5e-2, rtol=5e-2)

    print("KERNEL_OK")
</pallas_src>

<mosaic_0001>
module attributes {stable_mosaic.version = 11 : i64} {
  func.func @_network_kernel(%arg0: i32, %arg1: memref<256x18xf32, #tpu.memory_space<vmem>>, %arg2: memref<256x5xf32, #tpu.memory_space<vmem>>, %arg3: memref<18x128xbf16, #tpu.memory_space<vmem>>, %arg4: memref<5x128xbf16, #tpu.memory_space<vmem>>, %arg5: memref<128x128xbf16, #tpu.memory_space<vmem>>, %arg6: memref<8x128xf32, #tpu.memory_space<vmem>>, %arg7: memref<1x256xf32, #tpu.memory_space<vmem>>) attributes {dimension_semantics = [#tpu.dimension_semantics<parallel>], iteration_bounds = array<i64: 2>, scalar_prefetch = 0 : i64, scratch_operands = 0 : i64, tpu.core_type = #tpu.core_type<tc>, window_params = [{transform_indices = @transform_0, window_bounds = array<i64: 256, 18>}, {transform_indices = @transform_1, window_bounds = array<i64: 256, 5>}, {pipeline_mode = #tpu.pipeline_mode<synchronous>, transform_indices = @transform_2, window_bounds = array<i64: 18, 128>}, {pipeline_mode = #tpu.pipeline_mode<synchronous>, transform_indices = @transform_3, window_bounds = array<i64: 5, 128>}, {pipeline_mode = #tpu.pipeline_mode<synchronous>, transform_indices = @transform_4, window_bounds = array<i64: 128, 128>}, {pipeline_mode = #tpu.pipeline_mode<synchronous>, transform_indices = @transform_5, window_bounds = array<i64: 8, 128>}, {transform_indices = @transform_6, window_bounds = array<i64: 1, 256>}]} {
    %c0 = arith.constant 0 : index
    %c0_0 = arith.constant 0 : index
    %0 = vector.load %arg6[%c0, %c0_0] : memref<8x128xf32, #tpu.memory_space<vmem>>, vector<1x128xf32>
    %c1 = arith.constant 1 : index
    %c0_1 = arith.constant 0 : index
    %1 = vector.load %arg6[%c1, %c0_1] : memref<8x128xf32, #tpu.memory_space<vmem>>, vector<1x128xf32>
    %c2 = arith.constant 2 : index
    %c0_2 = arith.constant 0 : index
    %2 = vector.load %arg6[%c2, %c0_2] : memref<8x128xf32, #tpu.memory_space<vmem>>, vector<1x128xf32>
    %3 = arith.truncf %2 : vector<1x128xf32> to vector<1x128xbf16>
    %c3 = arith.constant 3 : index
    %c0_3 = arith.constant 0 : index
    %4 = vector.load %arg6[%c3, %c0_3] : memref<8x128xf32, #tpu.memory_space<vmem>>, vector<1x1xf32>
    %c0_4 = arith.constant 0 : index
    %c0_5 = arith.constant 0 : index
    %5 = vector.load %arg1[%c0_4, %c0_5] : memref<256x18xf32, #tpu.memory_space<vmem>>, vector<256x18xf32>
    %6 = arith.truncf %5 : vector<256x18xf32> to vector<256x18xbf16>
    %c0_6 = arith.constant 0 : index
    %c0_7 = arith.constant 0 : index
    %7 = vector.load %arg2[%c0_6, %c0_7] : memref<256x5xf32, #tpu.memory_space<vmem>>, vector<256x5xf32>
    %8 = arith.truncf %7 : vector<256x5xf32> to vector<256x5xbf16>
    %c0_8 = arith.constant 0 : index
    %c0_9 = arith.constant 0 : index
    %9 = vector.load %arg3[%c0_8, %c0_9] : memref<18x128xbf16, #tpu.memory_space<vmem>>, vector<18x128xbf16>
    %cst = arith.constant dense<0.000000e+00> : vector<256x128xf32>
    %10 = tpu.matmul %6, %9, %cst {dimension_numbers = #tpu.dot_dimension_numbers<[1], [0], [0], [1], [0, 0, 1, 1], [], []>} : vector<256x18xbf16>, vector<18x128xbf16>, vector<256x128xf32> -> vector<256x128xf32>
    %c0_10 = arith.constant 0 : index
    %c0_11 = arith.constant 0 : index
    %11 = vector.load %arg4[%c0_10, %c0_11] : memref<5x128xbf16, #tpu.memory_space<vmem>>, vector<5x128xbf16>
    %cst_12 = arith.constant dense<0.000000e+00> : vector<256x128xf32>
    %12 = tpu.matmul %8, %11, %cst_12 {dimension_numbers = #tpu.dot_dimension_numbers<[1], [0], [0], [1], [0, 0, 1, 1], [], []>} : vector<256x5xbf16>, vector<5x128xbf16>, vector<256x128xf32> -> vector<256x128xf32>
    %13 = arith.addf %10, %12 : vector<256x128xf32>
    %14 = vector.broadcast %0 : vector<1x128xf32> to vector<256x128xf32>
    %15 = arith.addf %13, %14 : vector<256x128xf32>
    %cst_13 = arith.constant 0.000000e+00 : f32
    %16 = vector.broadcast %cst_13 : f32 to vector<256x128xf32>
    %17 = arith.maximumf %15, %16 : vector<256x128xf32>
    %18 = arith.truncf %17 : vector<256x128xf32> to vector<256x128xbf16>
    %c0_14 = arith.constant 0 : index
    %c0_15 = arith.constant 0 : index
    %19 = vector.load %arg5[%c0_14, %c0_15] : memref<128x128xbf16, #tpu.memory_space<vmem>>, vector<128x128xbf16>
    %cst_16 = arith.constant dense<0.000000e+00> : vector<256x128xf32>
    %20 = tpu.matmul %18, %19, %cst_16 {dimension_numbers = #tpu.dot_dimension_numbers<[1], [0], [0], [1], [0, 0, 1, 1], [], []>} : vector<256x128xbf16>, vector<128x128xbf16>, vector<256x128xf32> -> vector<256x128xf32>
    %21 = vector.broadcast %1 : vector<1x128xf32> to vector<256x128xf32>
    %22 = arith.addf %20, %21 : vector<256x128xf32>
    %cst_17 = arith.constant 0.000000e+00 : f32
    %23 = vector.broadcast %cst_17 : f32 to vector<256x128xf32>
    %24 = arith.maximumf %22, %23 : vector<256x128xf32>
    %25 = arith.truncf %24 : vector<256x128xf32> to vector<256x128xbf16>
    %cst_18 = arith.constant dense<0.000000e+00> : vector<1x256xf32>
    %26 = tpu.matmul %3, %25, %cst_18 {dimension_numbers = #tpu.dot_dimension_numbers<[1], [1], [0], [0], [0, 0, 1, 0], [], []>} : vector<1x128xbf16>, vector<256x128xbf16>, vector<1x256xf32> -> vector<1x256xf32>
    %27 = vector.broadcast %4 : vector<1x1xf32> to vector<1x256xf32>
    %28 = arith.addf %26, %27 : vector<1x256xf32>
    %cst_19 = arith.constant 2.000000e+01 : f32
    %29 = vector.broadcast %cst_19 : f32 to vector<1x256xf32>
    %30 = arith.minimumf %28, %29 : vector<1x256xf32>
    %31 = math.exp %30 : vector<1x256xf32>
    %32 = math.log1p %31 : vector<1x256xf32>
    %cst_20 = arith.constant 2.000000e+01 : f32
    %33 = vector.broadcast %cst_20 : f32 to vector<1x256xf32>
    %34 = arith.cmpf ogt, %28, %33 : vector<1x256xf32>
    %35 = arith.select %34, %28, %32 : vector<1x256xi1>, vector<1x256xf32>
    %c0_21 = arith.constant 0 : index
    %c0_22 = arith.constant 0 : index
    %36 = vector.load %arg7[%c0_21, %c0_22] : memref<1x256xf32, #tpu.memory_space<vmem>>, vector<1x256xf32>
    tpu.vector_store %arg7[%c0_21, %c0_22], %35 {strides = array<i32>} : memref<1x256xf32, #tpu.memory_space<vmem>>, vector<1x256xf32>,
    return
  }
  func.func @transform_0(%arg0: i32) -> (i32, i32) {
    %c0_i32 = arith.constant 0 : i32
    %c0_i32_0 = arith.constant 0 : i32
    return %arg0, %c0_i32 : i32, i32
  }
  func.func @transform_1(%arg0: i32) -> (i32, i32) {
    %c0_i32 = arith.constant 0 : i32
    %c0_i32_0 = arith.constant 0 : i32
    return %arg0, %c0_i32 : i32, i32
  }
  func.func @transform_2(%arg0: i32) -> (i32, i32) {
    %c0_i32 = arith.constant 0 : i32
    %c0_i32_0 = arith.constant 0 : i32
    %c0_i32_1 = arith.constant 0 : i32
    return %c0_i32, %c0_i32_0 : i32, i32
  }
  func.func @transform_3(%arg0: i32) -> (i32, i32) {
    %c0_i32 = arith.constant 0 : i32
    %c0_i32_0 = arith.constant 0 : i32
    %c0_i32_1 = arith.constant 0 : i32
    return %c0_i32, %c0_i32_0 : i32, i32
  }
  func.func @transform_4(%arg0: i32) -> (i32, i32) {
    %c0_i32 = arith.constant 0 : i32
    %c0_i32_0 = arith.constant 0 : i32
    %c0_i32_1 = arith.constant 0 : i32
    return %c0_i32, %c0_i32_0 : i32, i32
  }
  func.func @transform_5(%arg0: i32) -> (i32, i32) {
    %c0_i32 = arith.constant 0 : i32
    %c0_i32_0 = arith.constant 0 : i32
    %c0_i32_1 = arith.constant 0 : i32
    return %c0_i32, %c0_i32_0 : i32, i32
  }
  func.func @transform_6(%arg0: i32) -> (i32, i32) {
    %c0_i32 = arith.constant 0 : i32
    %c0_i32_0 = arith.constant 0 : i32
    return %c0_i32, %arg0 : i32, i32
  }
}

</mosaic_0001>

<llo_original>
// kernel: tpu_custom_call.1
$region0: #{tpu_custom_call.1}
  #allocation0 [shape = 'u32[]', space=smem, size = 0x4, offset = 0x4, fixed_abs, tag = 'smem constant byte address 0x4 - core index']
  #allocation1 [shape = 'u32[144,128]{1,0:T(1,128)}', space=vmem, size = 0x12000, scoped, tag = 'internal scratch']
  %s0 = inlined_call_operand.vmem [shape: f32[300,18], index: 0, kind: input, shape index: {}]
  %s1 = inlined_call_operand.vmem [shape: f32[300,5], index: 1, kind: input, shape index: {}]
  %s2 = inlined_call_operand.vmem [shape: bf16[18,128], index: 2, kind: input, shape index: {}]
  %s3 = inlined_call_operand.vmem [shape: bf16[5,128], index: 3, kind: input, shape index: {}]
  %s4 = inlined_call_operand.vmem [shape: bf16[128,128], index: 4, kind: input, shape index: {}]
  %s5 = inlined_call_operand.vmem [shape: f32[8,128], index: 5, kind: input, shape index: {}]
  %s6 = inlined_call_operand.hbm [shape: f32[1,300], index: 6, kind: output, shape index: {}]
  %s7 = sld [smem:[#allocation0]]
  $region57: #{tpu_custom_call.1} parent=0
    _
  %s9 = ssub.s32 1, %s7
  %s10 = scalar_select 0, %s9, %s7
  $region1: #{tpu_custom_call.1} parent=0
    #allocation2 [shape = 'u8[2048]{0}', space=vmem, size = 0x800, scoped, tag = 'output window, operand 0']
    #allocation3 [shape = 's32[2]{0}', space=sflag, size = 0x8, scoped, tag = 'scoped memory for tpu_custom_call.1']
    %11 = vsyncpa [#allocation3], 0
    %s12 = scalar_lea.sflag [#allocation3], 1
    %13 = vsyncpa %s12, 0
    loop: start=0, step=1, limit=4
    $region2: #{tpu_custom_call.1} parent=1 // loop_pre_header
      _
    $region3: #{tpu_custom_call.1} parent=1 // loop_header
      %s15 = sphi 0, %s19
      %p16 = scmp.ge.s32.totalorder %s15, 4
      %s25 = sphi 0, %s27
      %s28 = sphi 0, %s25
      %s29 = sphi 0, %s28
      %s45 = sphi 0, %s29
      %s51 = sphi 0, %s53
      %s54 = sphi 0, %s51
      %s55 = sphi 0, %s54
      %s71 = sphi 0, %s55
      %s75 = sphi 0, %s75
      %s77 = sphi 0, %s75
      %s78 = sphi 0, %s77
      %s92 = sphi 0, %s78
      %s96 = sphi 0, %s96
      %s98 = sphi 0, %s96
      %s99 = sphi 0, %s98
      %s113 = sphi 0, %s99
      %s117 = sphi 0, %s117
      %s119 = sphi 0, %s117
      %s120 = sphi 0, %s119
      %s134 = sphi 0, %s120
      %s138 = sphi 0, %s138
      %s140 = sphi 0, %s138
      %s141 = sphi 0, %s140
      %s155 = sphi 0, %s141
      %s161 = sphi 0, %s163
      %s164 = sphi 0, %s161
      %s165 = sphi 0, %s164
      %s181 = sphi 0, %s165
    $region4: #{tpu_custom_call.1} parent=1 // loop_header_branch
      %18 = sbr.rel (%p16) target = $region8
    $region5: #{tpu_custom_call.1} parent=1 // loop_body
      %s20 = ssub.s32 %s15, 1
      %s21 = ssub.s32 %s15, 2
      %s22 = sadd.s32 %s15, 1
      %s23 = ssub.s32 %s15, %s22
      %p24 = scmp.eq.s32.totalorder %s23, 0
      %s26 = sadd.s32 %s25, 1
      %s27 = scalar_select %p24, %s25, %s26
      %p30 = pneg %p24
      %p31 = scmp.eq.s32.totalorder %s15, 1
      %p32 = por %p30, %p31
      %p33 = scmp.ne.s32.totalorder %s25, %s28
      %p34 = scmp.eq.s32.totalorder %s15, 0
      %p35 = por %p33, %p34
      %p36 = scmp.ne.s32.totalorder %s25, %s28
      %p37 = scmp.eq.s32.totalorder %s20, 1
      %p38 = por %p36, %p37
      %p39 = scmp.ne.s32.totalorder %s28, %s29
      %p40 = scmp.eq.s32.totalorder %s20, 0
      %p41 = por %p39, %p40
      %p42 = scmp.ne.s32.totalorder %s28, %s29
      %p43 = scmp.eq.s32.totalorder %s21, 1
      %p44 = por %p42, %p43
      %p46 = scmp.ne.s32.totalorder %s29, %s45
      %p47 = scmp.eq.s32.totalorder %s21, 0
      %p48 = por %p46, %p47
      %s49 = ssub.s32 %s15, %s22
      %p50 = scmp.eq.s32.totalorder %s49, 0
      %s52 = sadd.s32 %s51, 1
      %s53 = scalar_select %p50, %s51, %s52
      %p56 = pneg %p50
      %p57 = scmp.eq.s32.totalorder %s15, 1
      %p58 = por %p56, %p57
      %p59 = scmp.ne.s32.totalorder %s51, %s54
      %p60 = scmp.eq.s32.totalorder %s15, 0
      %p61 = por %p59, %p60
      %p62 = scmp.ne.s32.totalorder %s51, %s54
      %p63 = scmp.eq.s32.totalorder %s20, 1
      %p64 = por %p62, %p63
      %p65 = scmp.ne.s32.totalorder %s54, %s55
      %p66 = scmp.eq.s32.totalorder %s20, 0
      %p67 = por %p65, %p66
      %p68 = scmp.ne.s32.totalorder %s54, %s55
      %p69 = scmp.eq.s32.totalorder %s21, 1
      %p70 = por %p68, %p69
      %p72 = scmp.ne.s32.totalorder %s55, %s71
      %p73 = scmp.eq.s32.totalorder %s21, 0
      %p74 = por %p72, %p73
      %s76 = sadd.s32 %s75, 1
      %p79 = scmp.eq.s32.totalorder %s15, 1
      %p80 = scmp.ne.s32.totalorder %s75, %s77
      %p81 = scmp.eq.s32.totalorder %s15, 0
      %p82 = por %p80, %p81
      %p83 = scmp.ne.s32.totalorder %s75, %s77
      %p84 = scmp.eq.s32.totalorder %s20, 1
      %p85 = por %p83, %p84
      %p86 = scmp.ne.s32.totalorder %s77, %s78
      %p87 = scmp.eq.s32.totalorder %s20, 0
      %p88 = por %p86, %p87
      %p89 = scmp.ne.s32.totalorder %s77, %s78
      %p90 = scmp.eq.s32.totalorder %s21, 1
      %p91 = por %p89, %p90
      %p93 = scmp.ne.s32.totalorder %s78, %s92
      %p94 = scmp.eq.s32.totalorder %s21, 0
      %p95 = por %p93, %p94
      %s97 = sadd.s32 %s96, 1
      %p100 = scmp.eq.s32.totalorder %s15, 1
      %p101 = scmp.ne.s32.totalorder %s96, %s98
      %p102 = scmp.eq.s32.totalorder %s15, 0
      %p103 = por %p101, %p102
      %p104 = scmp.ne.s32.totalorder %s96, %s98
      %p105 = scmp.eq.s32.totalorder %s20, 1
      %p106 = por %p104, %p105
      %p107 = scmp.ne.s32.totalorder %s98, %s99
      %p108 = scmp.eq.s32.totalorder %s20, 0
      %p109 = por %p107, %p108
      %p110 = scmp.ne.s32.totalorder %s98, %s99
      %p111 = scmp.eq.s32.totalorder %s21, 1
      %p112 = por %p110, %p111
      %p114 = scmp.ne.s32.totalorder %s99, %s113
      %p115 = scmp.eq.s32.totalorder %s21, 0
      %p116 = por %p114, %p115
      %s118 = sadd.s32 %s117, 1
      %p121 = scmp.eq.s32.totalorder %s15, 1
      %p122 = scmp.ne.s32.totalorder %s117, %s119
      %p123 = scmp.eq.s32.totalorder %s15, 0
      %p124 = por %p122, %p123
      %p125 = scmp.ne.s32.totalorder %s117, %s119
      %p126 = scmp.eq.s32.totalorder %s20, 1
      %p127 = por %p125, %p126
      %p128 = scmp.ne.s32.totalorder %s119, %s120
      %p129 = scmp.eq.s32.totalorder %s20, 0
      %p130 = por %p128, %p129
      %p131 = scmp.ne.s32.totalorder %s119, %s120
      %p132 = scmp.eq.s32.totalorder %s21, 1
      %p133 = por %p131, %p132
      %p135 = scmp.ne.s32.totalorder %s120, %s134
      %p136 = scmp.eq.s32.totalorder %s21, 0
      %p137 = por %p135, %p136
      %s139 = sadd.s32 %s138, 1
      %p142 = scmp.eq.s32.totalorder %s15, 1
      %p143 = scmp.ne.s32.totalorder %s138, %s140
      %p144 = scmp.eq.s32.totalorder %s15, 0
      %p145 = por %p143, %p144
      %p146 = scmp.ne.s32.totalorder %s138, %s140
      %p147 = scmp.eq.s32.totalorder %s20, 1
      %p148 = por %p146, %p147
      %p149 = scmp.ne.s32.totalorder %s140, %s141
      %p150 = scmp.eq.s32.totalorder %s20, 0
      %p151 = por %p149, %p150
      %p152 = scmp.ne.s32.totalorder %s140, %s141
      %p153 = scmp.eq.s32.totalorder %s21, 1
      %p154 = por %p152, %p153
      %p156 = scmp.ne.s32.totalorder %s141, %s155
      %p157 = scmp.eq.s32.totalorder %s21, 0
      %p158 = por %p156, %p157
      %s159 = ssub.s32 %s15, %s22
      %p160 = scmp.eq.s32.totalorder %s159, 0
      %s162 = sadd.s32 %s161, 1
      %s163 = scalar_select %p160, %s161, %s162
      %p166 = pneg %p160
      %p167 = scmp.eq.s32.totalorder %s15, 1
      %p168 = por %p166, %p167
      %p169 = scmp.ne.s32.totalorder %s161, %s164
      %p170 = scmp.eq.s32.totalorder %s15, 0
      %p171 = por %p169, %p170
      %p172 = scmp.ne.s32.totalorder %s161, %s164
      %p173 = scmp.eq.s32.totalorder %s20, 1
      %p174 = por %p172, %p173
      %p175 = scmp.ne.s32.totalorder %s164, %s165
      %p176 = scmp.eq.s32.totalorder %s20, 0
      %p177 = por %p175, %p176
      %p178 = scmp.ne.s32.totalorder %s164, %s165
      %p179 = scmp.eq.s32.totalorder %s21, 1
      %p180 = por %p178, %p179
      %p182 = scmp.ne.s32.totalorder %s165, %s181
      %p183 = scmp.eq.s32.totalorder %s21, 0
      %p184 = por %p182, %p183
      %p185 = scmp.le.s32.totalorder 1, %s15
      %p186 = scmp.lt.s32.totalorder %s15, 3
      %p187 = pnand %p185, %p186
      %p188 = pneg %p187
      // Predicated region
      $region9: #{tpu_custom_call.1} parent=5 // pred_check
        _
      $region10: #{tpu_custom_call.1} parent=5 // pred_check_branch
        %190 = sbr.rel (%p187) target = $region12
      $region11: #{tpu_custom_call.1} parent=5 // pred_region
        %s191 = ssub.s32 %s15, 1
        // Predicated region
        $region13: #{tpu_custom_call.1} parent=11 // pred_check
          %p192 = pneg %p88
        $region14: #{tpu_custom_call.1} parent=11 // pred_check_branch
          %194 = sbr.rel (%p192) target = $region16
        $region15: #{tpu_custom_call.1} parent=11 // pred_region
          _
        $region16: #{tpu_custom_call.1} parent=11 // pred_fallthru
          _
        // Predicated region
        $region17: #{tpu_custom_call.1} parent=11 // pred_check
          %p195 = pneg %p109
        $region18: #{tpu_custom_call.1} parent=11 // pred_check_branch
          %197 = sbr.rel (%p195) target = $region20
        $region19: #{tpu_custom_call.1} parent=11 // pred_region
          _
        $region20: #{tpu_custom_call.1} parent=11 // pred_fallthru
          _
        // Predicated region
        $region21: #{tpu_custom_call.1} parent=11 // pred_check
          %p198 = pneg %p130
        $region22: #{tpu_custom_call.1} parent=11 // pred_check_branch
          %200 = sbr.rel (%p198) target = $region24
        $region23: #{tpu_custom_call.1} parent=11 // pred_region
          _
        $region24: #{tpu_custom_call.1} parent=11 // pred_fallthru
          _
        // Predicated region
        $region25: #{tpu_custom_call.1} parent=11 // pred_check
          %p201 = pneg %p151
        $region26: #{tpu_custom_call.1} parent=11 // pred_check_branch
          %203 = sbr.rel (%p201) target = $region28
        $region27: #{tpu_custom_call.1} parent=11 // pred_region
          _
        $region28: #{tpu_custom_call.1} parent=11 // pred_fallthru
          _
      $region12: #{tpu_custom_call.1} parent=5 // pred_fallthru
        _
      %p204 = scmp.lt.s32.totalorder %s15, 2
      // Predicated region
      $region29: #{tpu_custom_call.1} parent=5 // pred_check
        %p205 = pneg %p204
      $region30: #{tpu_custom_call.1} parent=5 // pred_check_branch
        %207 = sbr.rel (%p205) target = $region32
      $region31: #{tpu_custom_call.1} parent=5 // pred_region
        // Predicated region
        $region33: #{tpu_custom_call.1} parent=31 // pred_check
          %p208 = pneg %p35
        $region34: #{tpu_custom_call.1} parent=31 // pred_check_branch
          %210 = sbr.rel (%p208) target = $region36
        $region35: #{tpu_custom_call.1} parent=31 // pred_region
          %s211 = smul.u32 32, %s15
          %s212 = ssub.s32 38, %s211
          %p213 = scmp.lt.s32.totalorder %s212, 32
          %s214 = scalar_select %p213, %s212, 32
          %s215 = smul.u32 128, %s214
          %p216 = scmp.lt.s32.totalorder %s211, 37
          %s217 = scalar_select %p216, %s211, 37
          %s218 = smul.addr %s217, 8
          %s219 = scalar_lea.vmem %s0, %s218
          %s220 = smul.u32 32, %s15
          %s221 = ssub.s32 38, %s220
          %p222 = scmp.lt.s32.totalorder %s221, 32
          %s223 = scalar_select %p222, %s221, 32
          %s224 = smul.u32 128, %s223
        $region36: #{tpu_custom_call.1} parent=31 // pred_fallthru
          _
        // Predicated region
        $region37: #{tpu_custom_call.1} parent=31 // pred_check
          %p225 = pneg %p61
        $region38: #{tpu_custom_call.1} parent=31 // pred_check_branch
          %227 = sbr.rel (%p225) target = $region40
        $region39: #{tpu_custom_call.1} parent=31 // pred_region
          %s228 = smul.u32 32, %s15
          %s229 = ssub.s32 38, %s228
          %p230 = scmp.lt.s32.totalorder %s229, 32
          %s231 = scalar_select %p230, %s229, 32
          %s232 = smul.u32 128, %s231
          %p233 = scmp.lt.s32.totalorder %s228, 37
          %s234 = scalar_select %p233, %s228, 37
          %s235 = smul.addr %s234, 8
          %s236 = scalar_lea.vmem %s1, %s235
          %s237 = smul.u32 32, %s15
          %s238 = ssub.s32 38, %s237
          %p239 = scmp.lt.s32.totalorder %s238, 32
          %s240 = scalar_select %p239, %s238, 32
          %s241 = smul.u32 128, %s240
        $region40: #{tpu_custom_call.1} parent=31 // pred_fallthru
          _
      $region32: #{tpu_custom_call.1} parent=5 // pred_fallthru
        _
      %p242 = scmp.le.s32.totalorder 1, %s15
      %p243 = scmp.lt.s32.totalorder %s15, 3
      %p244 = pnand %p242, %p243
      %p245 = pneg %p244
      // Predicated region
      $region41: #{tpu_custom_call.1} parent=5 // pred_check
        _
      $region42: #{tpu_custom_call.1} parent=5 // pred_check_branch
        %247 = sbr.rel (%p244) target = $region44
      $region43: #{tpu_custom_call.1} parent=5 // pred_region
        %s248 = ssub.s32 %s15, 1
        %s249 = smul.u32 32, %s20
        %s250 = ssub.s32 38, %s249
        %p251 = scmp.lt.s32.totalorder %s250, 32
        %s252 = scalar_select %p251, %s250, 32
        %s253 = smul.u32 128, %s252
        %p254 = scmp.lt.s32.totalorder %s249, 37
        %s255 = scalar_select %p254, %s249, 37
        %s256 = smul.addr %s255, 8
        %s257 = scalar_lea.vmem %s0, %s256
        %p258 = pneg %p41
        %p259 = pneg %p38
        %s260 = smul.u32 32, %s20
        %s261 = ssub.s32 38, %s260
        %p262 = scmp.lt.s32.totalorder %s261, 32
        %s263 = scalar_select %p262, %s261, 32
        %s264 = smul.u32 128, %s263
        %p265 = scmp.lt.s32.totalorder %s260, 37
        %s266 = scalar_select %p265, %s260, 37
        %s267 = smul.addr %s266, 8
        %s268 = scalar_lea.vmem %s1, %s267
        %p269 = pneg %p67
        %p270 = pneg %p64
        %p271 = pneg %p88
        %p272 = pneg %p85
        %p273 = pneg %p109
        %p274 = pneg %p106
        %p275 = pneg %p130
        %p276 = pneg %p127
        %p277 = pneg %p151
        %p278 = pneg %p148
        %p279 = pneg %p177
        %p280 = pneg %p174
        %s281 = sand.u32 %s164, 1
        %s282 = scalar_lea.sflag [#allocation3], %s281
        %s283 = sand.u32 %s164, 1
        %s284 = smul.addr %s283, 2
        %s285 = scalar_lea.vmem [#allocation2], %s284
        %s286 = smul.u32 32, %s20
        %s287 = ssub.s32 38, %s286
        %p288 = scmp.lt.s32.totalorder %s287, 32
        %s289 = scalar_select %p288, %s287, 32
        %s290 = smul.u32 128, %s289
        %p291 = scmp.lt.s32.totalorder %s286, 37
        %s292 = scalar_select %p291, %s286, 37
        %s293 = smul.addr %s292, 8
        %s294 = scalar_lea.vmem %s0, %s293
        %s295 = smul.u32 32, %s20
        %s296 = ssub.s32 38, %s295
        %p297 = scmp.lt.s32.totalorder %s296, 32
        %s298 = scalar_select %p297, %s296, 32
        %s299 = smul.u32 128, %s298
        %s300 = smul.u32 32, %s20
        %s301 = ssub.s32 38, %s300
        %p302 = scmp.lt.s32.totalorder %s301, 32
        %s303 = scalar_select %p302, %s301, 32
        %s304 = smul.u32 128, %s303
        %p305 = scmp.lt.s32.totalorder %s300, 37
        %s306 = scalar_select %p305, %s300, 37
        %s307 = smul.addr %s306, 8
        %s308 = scalar_lea.vmem %s1, %s307
        %s309 = smul.u32 32, %s20
        %s310 = ssub.s32 38, %s309
        %p311 = scmp.lt.s32.totalorder %s310, 32
        %s312 = scalar_select %p311, %s310, 32
        %s313 = smul.u32 128, %s312
        %s314 = smul.u32 2, %s20
        %s315 = ssub.s32 3, %s314
        %p316 = scmp.lt.s32.totalorder %s315, 2
        %s317 = scalar_select %p316, %s315, 2
        %s318 = smul.u32 16, %s317
        %v320 = vld [vmem:[%s5] sm:$0x1]
        %v321 = vld [vmem:[%s5 + $0x1] sm:$0x1]
        %v322 = vld [vmem:[%s5 + $0x2] sm:$0x1]
        %v323 = vpack.c.bf16 %v322, %v322
        %v324 = vld [vmem:[%s5 + $0x3] sm:$0x1]
        %v325 = vld [vmem:[%s294] sm:$0xff]
        %v326 = vld [vmem:[%s294 + $0x8] sm:$0xff]
        %v327 = vld [vmem:[%s294 + $0x10] sm:$0xff]
        %v328 = vld [vmem:[%s294 + $0x18] sm:$0xff]
        %v329 = vld [vmem:[%s294 + $0x20] sm:$0xff]
        %v330 = vld [vmem:[%s294 + $0x28] sm:$0xff]
        %v331 = vld [vmem:[%s294 + $0x30] sm:$0xff]
        %v332 = vld [vmem:[%s294 + $0x38] sm:$0xff]
        %v333 = vld [vmem:[%s294 + $0x40] sm:$0xff]
        %v334 = vld [vmem:[%s294 + $0x48] sm:$0xff]
        %v335 = vld [vmem:[%s294 + $0x50] sm:$0xff]
        %v336 = vld [vmem:[%s294 + $0x58] sm:$0xff]
        %v337 = vld [vmem:[%s294 + $0x60] sm:$0xff]
        %v338 = vld [vmem:[%s294 + $0x68] sm:$0xff]
        %v339 = vld [vmem:[%s294 + $0x70] sm:$0xff]
        %v340 = vld [vmem:[%s294 + $0x78] sm:$0xff]
        %v341 = vld [vmem:[%s294 + $0x80] sm:$0xff]
        %v342 = vld [vmem:[%s294 + $0x88] sm:$0xff]
        %v343 = vld [vmem:[%s294 + $0x90] sm:$0xff]
        %v344 = vld [vmem:[%s294 + $0x98] sm:$0xff]
        %v345 = vld [vmem:[%s294 + $0xa0] sm:$0xff]
        %v346 = vld [vmem:[%s294 + $0xa8] sm:$0xff]
        %v347 = vld [vmem:[%s294 + $0xb0] sm:$0xff]
        %v348 = vld [vmem:[%s294 + $0xb8] sm:$0xff]
        %v349 = vld [vmem:[%s294 + $0xc0] sm:$0xff]
        %v350 = vld [vmem:[%s294 + $0xc8] sm:$0xff]
        %v351 = vld [vmem:[%s294 + $0xd0] sm:$0xff]
        %v352 = vld [vmem:[%s294 + $0xd8] sm:$0xff]
        %v353 = vld [vmem:[%s294 + $0xe0] sm:$0xff]
        %v354 = vld [vmem:[%s294 + $0xe8] sm:$0xff]
        %v355 = vld [vmem:[%s294 + $0xf0] sm:$0xff]
        %v356 = vld [vmem:[%s294 + $0xf8] sm:$0xff]
        %v357 = vpack.c.bf16 %v326, %v325
        %v358 = vpack.c.bf16 %v328, %v327
        %v359 = vpack.c.bf16 %v330, %v329
        %v360 = vpack.c.bf16 %v332, %v331
        %v361 = vpack.c.bf16 %v334, %v333
        %v362 = vpack.c.bf16 %v336, %v335
        %v363 = vpack.c.bf16 %v338, %v337
        %v364 = vpack.c.bf16 %v340, %v339
        %v365 = vpack.c.bf16 %v342, %v341
        %v366 = vpack.c.bf16 %v344, %v343
        %v367 = vpack.c.bf16 %v346, %v345
        %v368 = vpack.c.bf16 %v348, %v347
        %v369 = vpack.c.bf16 %v350, %v349
        %v370 = vpack.c.bf16 %v352, %v351
        %v371 = vpack.c.bf16 %v354, %v353
        %v372 = vpack.c.bf16 %v356, %v355
        %v373 = vld [vmem:[%s308] sm:$0xff]
        %v374 = vld [vmem:[%s308 + $0x8] sm:$0xff]
        %v375 = vld [vmem:[%s308 + $0x10] sm:$0xff]
        %v376 = vld [vmem:[%s308 + $0x18] sm:$0xff]
        %v377 = vld [vmem:[%s308 + $0x20] sm:$0xff]
        %v378 = vld [vmem:[%s308 + $0x28] sm:$0xff]
        %v379 = vld [vmem:[%s308 + $0x30] sm:$0xff]
        %v380 = vld [vmem:[%s308 + $0x38] sm:$0xff]
        %v381 = vld [vmem:[%s308 + $0x40] sm:$0xff]
        %v382 = vld [vmem:[%s308 + $0x48] sm:$0xff]
        %v383 = vld [vmem:[%s308 + $0x50] sm:$0xff]
        %v384 = vld [vmem:[%s308 + $0x58] sm:$0xff]
        %v385 = vld [vmem:[%s308 + $0x60] sm:$0xff]
        %v386 = vld [vmem:[%s308 + $0x68] sm:$0xff]
        %v387 = vld [vmem:[%s308 + $0x70] sm:$0xff]
        %v388 = vld [vmem:[%s308 + $0x78] sm:$0xff]
        %v389 = vld [vmem:[%s308 + $0x80] sm:$0xff]
        %v390 = vld [vmem:[%s308 + $0x88] sm:$0xff]
        %v391 = vld [vmem:[%s308 + $0x90] sm:$0xff]
        %v392 = vld [vmem:[%s308 + $0x98] sm:$0xff]
        %v393 = vld [vmem:[%s308 + $0xa0] sm:$0xff]
        %v394 = vld [vmem:[%s308 + $0xa8] sm:$0xff]
        %v395 = vld [vmem:[%s308 + $0xb0] sm:$0xff]
        %v396 = vld [vmem:[%s308 + $0xb8] sm:$0xff]
        %v397 = vld [vmem:[%s308 + $0xc0] sm:$0xff]
        %v398 = vld [vmem:[%s308 + $0xc8] sm:$0xff]
        %v399 = vld [vmem:[%s308 + $0xd0] sm:$0xff]
        %v400 = vld [vmem:[%s308 + $0xd8] sm:$0xff]
        %v401 = vld [vmem:[%s308 + $0xe0] sm:$0xff]
        %v402 = vld [vmem:[%s308 + $0xe8] sm:$0xff]
        %v403 = vld [vmem:[%s308 + $0xf0] sm:$0xff]
        %v404 = vld [vmem:[%s308 + $0xf8] sm:$0xff]
        %v405 = vpack.c.bf16 %v374, %v373
        %v406 = vpack.c.bf16 %v376, %v375
        %v407 = vpack.c.bf16 %v378, %v377
        %v408 = vpack.c.bf16 %v380, %v379
        %v409 = vpack.c.bf16 %v382, %v381
        %v410 = vpack.c.bf16 %v384, %v383
        %v411 = vpack.c.bf16 %v386, %v385
        %v412 = vpack.c.bf16 %v388, %v387
        %v413 = vpack.c.bf16 %v390, %v389
        %v414 = vpack.c.bf16 %v392, %v391
        %v415 = vpack.c.bf16 %v394, %v393
        %v416 = vpack.c.bf16 %v396, %v395
        %v417 = vpack.c.bf16 %v398, %v397
        %v418 = vpack.c.bf16 %v400, %v399
        %v419 = vpack.c.bf16 %v402, %v401
        %v420 = vpack.c.bf16 %v404, %v403
        %v421 = vld [vmem:[%s2] sm:$0xf]
        %v422 = vld [vmem:[%s2 + $0x4] sm:$0xf]
        %v423 = vld [vmem:[%s2 + $0x8] sm:$0x1]
        %v424 = vld [vmem:[%s3] sm:$0x7]
        %vm425 = vcmask 39936
        %v427 = vsel %vm425, %v405, 0
        %v430 = vsel %vm425, %v406, 0
        %v433 = vsel %vm425, %v407, 0
        %v436 = vsel %vm425, %v408, 0
        %v439 = vsel %vm425, %v409, 0
        %v442 = vsel %vm425, %v410, 0
        %v445 = vsel %vm425, %v411, 0
        %v448 = vsel %vm425, %v412, 0
        %v451 = vsel %vm425, %v413, 0
        %v454 = vsel %vm425, %v414, 0
        %v457 = vsel %vm425, %v415, 0
        %v460 = vsel %vm425, %v416, 0
        %v463 = vsel %vm425, %v417, 0
        %v466 = vsel %vm425, %v418, 0
        %v469 = vsel %vm425, %v419, 0
        %v472 = vsel %vm425, %v420, 0
        %vm474 = vcmask 1041408
        %vm475 = vcmask 1042432
        %v476 = vsel %vm474, 4294967295, 65535
        %v477 = vsel %vm475, %v476, 0
        %v479 = vand.u32 %v424, %v477
        %481 = vmatprep.subr.bf16.mxu0 0
        %482 = vmatpush1.bf16.msra.mxu0 0
        %483 = vmatprep.subr.bf16.mxu0 0
        %484 = vmatpush1.bf16.msra.mxu0 0
        %485 = vmatprep.subr.bf16.mxu0 0
        %486 = vmatpush1.bf16.msra.mxu0 0
        %487 = vmatprep.subr.bf16.mxu0 0
        %488 = vmatpush1.bf16.msra.mxu0 0
        %489 = vmatprep.subr.bf16.mxu0 0
        %490 = vmatpush1.bf16.msra.mxu0 0
        %491 = vmatprep.subr.bf16.mxu0 0
        %492 = vmatpush1.bf16.msra.mxu0 0
        %493 = vmatprep.subr.bf16.mxu0 0
        %494 = vmatpush1.bf16.msra.mxu0 0
        %495 = vmatprep.subr.bf16.mxu0 0
        %496 = vmatpush1.bf16.msra.mxu0 %v479
        %497 = vmatprep.subr.bf16.mxu0 0
        %498 = vmatpush2.bf16.msra.mxu0 0
        %499 = vmatprep.subr.bf16.mxu0 0
        %500 = vmatpush2.bf16.msra.mxu0 0
        %501 = vmatprep.subr.bf16.mxu0 0
        %502 = vmatpush2.bf16.msra.mxu0 0
        %503 = vmatprep.subr.bf16.mxu0 0
        %504 = vmatpush2.bf16.msra.mxu0 0
        %505 = vmatprep.subr.bf16.mxu0 0
        %506 = vmatpush2.bf16.msra.mxu0 0
        %507 = vmatprep.subr.bf16.mxu0 0
        %508 = vmatpush2.bf16.msra.mxu0 0
        %509 = vmatprep.subr.bf16.mxu0 0
        %510 = vmatpush2.bf16.msra.mxu0 0
        %511 = vmatprep.subr.bf16.mxu0 0
        %512 = vmatpush2.bf16.msra.mxu0 0
        %513 = vmatprep.mubr.bf16.mxu0 0
        %514 = vmatmul.mubr.bf16.gmra.mxu0 %v427
        %v515 = vpop.f32.mrf.mxu0
        %v516 = vadd.f32 0.0, %v515
        %v517 = vpop.f32.mrf.mxu0
        %v518 = vpop.f32.mrf.mxu0
        %v519 = vadd.f32 0.0, %v518
        %v520 = vpop.f32.mrf.mxu0
        %521 = vmatprep.mubr.bf16.mxu0 0
        %522 = vmatmul.mubr.bf16.gmra.mxu0 %v430
        %v523 = vpop.f32.mrf.mxu0
        %v524 = vadd.f32 0.0, %v523
        %v525 = vpop.f32.mrf.mxu0
        %v526 = vpop.f32.mrf.mxu0
        %v527 = vadd.f32 0.0, %v526
        %v528 = vpop.f32.mrf.mxu0
        %529 = vmatprep.mubr.bf16.mxu0 0
        %530 = vmatmul.mubr.bf16.gmra.mxu0 %v433
        %v531 = vpop.f32.mrf.mxu0
        %v532 = vadd.f32 0.0, %v531
        %v533 = vpop.f32.mrf.mxu0
        %v534 = vpop.f32.mrf.mxu0
        %v535 = vadd.f32 0.0, %v534
        %v536 = vpop.f32.mrf.mxu0
        %537 = vmatprep.mubr.bf16.mxu0 0
        %538 = vmatmul.mubr.bf16.gmra.mxu0 %v436
        %v539 = vpop.f32.mrf.mxu0
        %v540 = vadd.f32 0.0, %v539
        %v541 = vpop.f32.mrf.mxu0
        %v542 = vpop.f32.mrf.mxu0
        %v543 = vadd.f32 0.0, %v542
        %v544 = vpop.f32.mrf.mxu0
        %545 = vmatprep.mubr.bf16.mxu0 0
        %546 = vmatmul.mubr.bf16.gmra.mxu0 %v439
        %v547 = vpop.f32.mrf.mxu0
        %v548 = vadd.f32 0.0, %v547
        %v549 = vpop.f32.mrf.mxu0
        %v550 = vpop.f32.mrf.mxu0
        %v551 = vadd.f32 0.0, %v550
        %v552 = vpop.f32.mrf.mxu0
        %553 = vmatprep.mubr.bf16.mxu0 0
        %554 = vmatmul.mubr.bf16.gmra.mxu0 %v442
        %v555 = vpop.f32.mrf.mxu0
        %v556 = vadd.f32 0.0, %v555
        %v557 = vpop.f32.mrf.mxu0
        %v558 = vpop.f32.mrf.mxu0
        %v559 = vadd.f32 0.0, %v558
        %v560 = vpop.f32.mrf.mxu0
        %561 = vmatprep.mubr.bf16.mxu0 0
        %562 = vmatmul.mubr.bf16.gmra.mxu0 %v445
        %v563 = vpop.f32.mrf.mxu0
        %v564 = vadd.f32 0.0, %v563
        %v565 = vpop.f32.mrf.mxu0
        %v566 = vpop.f32.mrf.mxu0
        %v567 = vadd.f32 0.0, %v566
        %v568 = vpop.f32.mrf.mxu0
        %569 = vmatprep.mubr.bf16.mxu0 0
        %570 = vmatmul.mubr.bf16.gmra.mxu0 %v448
        %v571 = vpop.f32.mrf.mxu0
        %v572 = vadd.f32 0.0, %v571
        %v573 = vpop.f32.mrf.mxu0
        %v574 = vpop.f32.mrf.mxu0
        %v575 = vadd.f32 0.0, %v574
        %v576 = vpop.f32.mrf.mxu0
        %577 = vmatprep.mubr.bf16.mxu0 0
        %578 = vmatmul.mubr.bf16.gmra.mxu0 %v451
        %v579 = vpop.f32.mrf.mxu0
        %v580 = vadd.f32 0.0, %v579
        %v581 = vpop.f32.mrf.mxu0
        %v582 = vpop.f32.mrf.mxu0
        %v583 = vadd.f32 0.0, %v582
        %v584 = vpop.f32.mrf.mxu0
        %585 = vmatprep.mubr.bf16.mxu0 0
        %586 = vmatmul.mubr.bf16.gmra.mxu0 %v454
        %v587 = vpop.f32.mrf.mxu0
        %v588 = vadd.f32 0.0, %v587
        %v589 = vpop.f32.mrf.mxu0
        %v590 = vpop.f32.mrf.mxu0
        %v591 = vadd.f32 0.0, %v590
        %v592 = vpop.f32.mrf.mxu0
        %593 = vmatprep.mubr.bf16.mxu0 0
        %594 = vmatmul.mubr.bf16.gmra.mxu0 %v457
        %v595 = vpop.f32.mrf.mxu0
        %v596 = vadd.f32 0.0, %v595
        %v597 = vpop.f32.mrf.mxu0
        %v598 = vpop.f32.mrf.mxu0
        %v599 = vadd.f32 0.0, %v598
        %v600 = vpop.f32.mrf.mxu0
        %601 = vmatprep.mubr.bf16.mxu0 0
        %602 = vmatmul.mubr.bf16.gmra.mxu0 %v460
        %v603 = vpop.f32.mrf.mxu0
        %v604 = vadd.f32 0.0, %v603
        %v605 = vpop.f32.mrf.mxu0
        %v606 = vpop.f32.mrf.mxu0
        %v607 = vadd.f32 0.0, %v606
        %v608 = vpop.f32.mrf.mxu0
        %609 = vmatprep.mubr.bf16.mxu0 0
        %610 = vmatmul.mubr.bf16.gmra.mxu0 %v463
        %v611 = vpop.f32.mrf.mxu0
        %v612 = vadd.f32 0.0, %v611
        %v613 = vpop.f32.mrf.mxu0
        %v614 = vpop.f32.mrf.mxu0
        %v615 = vadd.f32 0.0, %v614
        %v616 = vpop.f32.mrf.mxu0
        %617 = vmatprep.mubr.bf16.mxu0 0
        %618 = vmatmul.mubr.bf16.gmra.mxu0 %v466
        %v619 = vpop.f32.mrf.mxu0
        %v620 = vadd.f32 0.0, %v619
        %v621 = vpop.f32.mrf.mxu0
        %v622 = vpop.f32.mrf.mxu0
        %v623 = vadd.f32 0.0, %v622
        %v624 = vpop.f32.mrf.mxu0
        %625 = vmatprep.mubr.bf16.mxu0 0
        %626 = vmatmul.mubr.bf16.gmra.mxu0 %v469
        %v627 = vpop.f32.mrf.mxu0
        %v628 = vadd.f32 0.0, %v627
        %v629 = vpop.f32.mrf.mxu0
        %v630 = vpop.f32.mrf.mxu0
        %v631 = vadd.f32 0.0, %v630
        %v632 = vpop.f32.mrf.mxu0
        %633 = vmatprep.mubr.bf16.mxu0 0
        %634 = vmatmul.mubr.bf16.gmra.mxu0 %v472
        %v635 = vpop.f32.mrf.mxu0
        %v636 = vadd.f32 0.0, %v635
        %v637 = vpop.f32.mrf.mxu0
        %v638 = vpop.f32.mrf.mxu0
        %v639 = vadd.f32 0.0, %v638
        %v640 = vpop.f32.mrf.mxu0
        %641 = vdwg.mxu0
        %v645 = vunpack.c.l.b16 %v421
        %v646 = vunpack.c.l.b16 %v422
        %v647 = vunpack.c.l.b16 %v423
        %v648 = vpack.c.b16 %v646, %v645
        %v649 = vpack.c.b16 %v647, %v647
        %vm651 = vcmask 146432
        %v653 = vsel %vm651, %v357, 0
        %v656 = vsel %vm651, %v358, 0
        %v659 = vsel %vm651, %v359, 0
        %v662 = vsel %vm651, %v360, 0
        %v665 = vsel %vm651, %v361, 0
        %v668 = vsel %vm651, %v362, 0
        %v671 = vsel %vm651, %v363, 0
        %v674 = vsel %vm651, %v364, 0
        %v677 = vsel %vm651, %v365, 0
        %v680 = vsel %vm651, %v366, 0
        %v683 = vsel %vm651, %v367, 0
        %v686 = vsel %vm651, %v368, 0
        %v689 = vsel %vm651, %v369, 0
        %v692 = vsel %vm651, %v370, 0
        %v695 = vsel %vm651, %v371, 0
        %v698 = vsel %vm651, %v372, 0
        %vm700 = vcmask 1040384
        %v702 = vsel %vm700, %v649, 0
        %704 = vmatprep.subr.bf16.mxu0 0
        %705 = vmatpush1.bf16.msra.mxu0 0
        %706 = vmatprep.subr.bf16.mxu0 0
        %707 = vmatpush1.bf16.msra.mxu0 0
        %708 = vmatprep.subr.bf16.mxu0 0
        %709 = vmatpush1.bf16.msra.mxu0 0
        %710 = vmatprep.subr.bf16.mxu0 0
        %711 = vmatpush1.bf16.msra.mxu0 0
        %712 = vmatprep.subr.bf16.mxu0 0
        %713 = vmatpush1.bf16.msra.mxu0 0
        %714 = vmatprep.subr.bf16.mxu0 0
        %715 = vmatpush1.bf16.msra.mxu0 0
        %716 = vmatprep.subr.bf16.mxu0 0
        %717 = vmatpush1.bf16.msra.mxu0 %v702
        %718 = vmatprep.subr.bf16.mxu0 0
        %719 = vmatpush1.bf16.msra.mxu0 %v648
        %720 = vmatprep.subr.bf16.mxu0 0
        %721 = vmatpush2.bf16.msra.mxu0 0
        %722 = vmatprep.subr.bf16.mxu0 0
        %723 = vmatpush2.bf16.msra.mxu0 0
        %724 = vmatprep.subr.bf16.mxu0 0
        %725 = vmatpush2.bf16.msra.mxu0 0
        %726 = vmatprep.subr.bf16.mxu0 0
        %727 = vmatpush2.bf16.msra.mxu0 0
        %728 = vmatprep.subr.bf16.mxu0 0
        %729 = vmatpush2.bf16.msra.mxu0 0
        %730 = vmatprep.subr.bf16.mxu0 0
        %731 = vmatpush2.bf16.msra.mxu0 0
        %732 = vmatprep.subr.bf16.mxu0 0
        %733 = vmatpush2.bf16.msra.mxu0 0
        %734 = vmatprep.subr.bf16.mxu0 0
        %735 = vmatpush2.bf16.msra.mxu0 0
        %736 = vmatprep.mubr.bf16.mxu0 0
        %737 = vmatmul.mubr.bf16.gmra.mxu0 %v653
        %v738 = vpop.f32.mrf.mxu0
        %v739 = vadd.f32 %v516, %v738
        %v740 = vpop.f32.mrf.mxu0
        %v741 = vpop.f32.mrf.mxu0
        %v742 = vadd.f32 %v519, %v741
        %v743 = vpop.f32.mrf.mxu0
        %744 = vmatprep.mubr.bf16.mxu0 0
        %745 = vmatmul.mubr.bf16.gmra.mxu0 %v656
        %v746 = vpop.f32.mrf.mxu0
        %v747 = vadd.f32 %v524, %v746
        %v748 = vpop.f32.mrf.mxu0
        %v749 = vpop.f32.mrf.mxu0
        %v750 = vadd.f32 %v527, %v749
        %v751 = vpop.f32.mrf.mxu0
        %752 = vmatprep.mubr.bf16.mxu0 0
        %753 = vmatmul.mubr.bf16.gmra.mxu0 %v659
        %v754 = vpop.f32.mrf.mxu0
        %v755 = vadd.f32 %v532, %v754
        %v756 = vpop.f32.mrf.mxu0
        %v757 = vpop.f32.mrf.mxu0
        %v758 = vadd.f32 %v535, %v757
        %v759 = vpop.f32.mrf.mxu0
        %760 = vmatprep.mubr.bf16.mxu0 0
        %761 = vmatmul.mubr.bf16.gmra.mxu0 %v662
        %v762 = vpop.f32.mrf.mxu0
        %v763 = vadd.f32 %v540, %v762
        %v764 = vpop.f32.mrf.mxu0
        %v765 = vpop.f32.mrf.mxu0
        %v766 = vadd.f32 %v543, %v765
        %v767 = vpop.f32.mrf.mxu0
        %768 = vmatprep.mubr.bf16.mxu0 0
        %769 = vmatmul.mubr.bf16.gmra.mxu0 %v665
        %v770 = vpop.f32.mrf.mxu0
        %v771 = vadd.f32 %v548, %v770
        %v772 = vpop.f32.mrf.mxu0
        %v773 = vpop.f32.mrf.mxu0
        %v774 = vadd.f32 %v551, %v773
        %v775 = vpop.f32.mrf.mxu0
        %776 = vmatprep.mubr.bf16.mxu0 0
        %777 = vmatmul.mubr.bf16.gmra.mxu0 %v668
        %v778 = vpop.f32.mrf.mxu0
        %v779 = vadd.f32 %v556, %v778
        %v780 = vpop.f32.mrf.mxu0
        %v781 = vpop.f32.mrf.mxu0
        %v782 = vadd.f32 %v559, %v781
        %v783 = vpop.f32.mrf.mxu0
        %784 = vmatprep.mubr.bf16.mxu0 0
        %785 = vmatmul.mubr.bf16.gmra.mxu0 %v671
        %v786 = vpop.f32.mrf.mxu0
        %v787 = vadd.f32 %v564, %v786
        %v788 = vpop.f32.mrf.mxu0
        %v789 = vpop.f32.mrf.mxu0
        %v790 = vadd.f32 %v567, %v789
        %v791 = vpop.f32.mrf.mxu0
        %792 = vmatprep.mubr.bf16.mxu0 0
        %793 = vmatmul.mubr.bf16.gmra.mxu0 %v674
        %v794 = vpop.f32.mrf.mxu0
        %v795 = vadd.f32 %v572, %v794
        %v796 = vpop.f32.mrf.mxu0
        %v797 = vpop.f32.mrf.mxu0
        %v798 = vadd.f32 %v575, %v797
        %v799 = vpop.f32.mrf.mxu0
        %800 = vmatprep.mubr.bf16.mxu0 0
        %801 = vmatmul.mubr.bf16.gmra.mxu0 %v677
        %v802 = vpop.f32.mrf.mxu0
        %v803 = vadd.f32 %v580, %v802
        %v804 = vpop.f32.mrf.mxu0
        %v805 = vpop.f32.mrf.mxu0
        %v806 = vadd.f32 %v583, %v805
        %v807 = vpop.f32.mrf.mxu0
        %808 = vmatprep.mubr.bf16.mxu0 0
        %809 = vmatmul.mubr.bf16.gmra.mxu0 %v680
        %v810 = vpop.f32.mrf.mxu0
        %v811 = vadd.f32 %v588, %v810
        %v812 = vpop.f32.mrf.mxu0
        %v813 = vpop.f32.mrf.mxu0
        %v814 = vadd.f32 %v591, %v813
        %v815 = vpop.f32.mrf.mxu0
        %816 = vmatprep.mubr.bf16.mxu0 0
        %817 = vmatmul.mubr.bf16.gmra.mxu0 %v683
        %v818 = vpop.f32.mrf.mxu0
        %v819 = vadd.f32 %v596, %v818
        %v820 = vpop.f32.mrf.mxu0
        %v821 = vpop.f32.mrf.mxu0
        %v822 = vadd.f32 %v599, %v821
        %v823 = vpop.f32.mrf.mxu0
        %824 = vmatprep.mubr.bf16.mxu0 0
        %825 = vmatmul.mubr.bf16.gmra.mxu0 %v686
        %v826 = vpop.f32.mrf.mxu0
        %v827 = vadd.f32 %v604, %v826
        %v828 = vpop.f32.mrf.mxu0
        %v829 = vpop.f32.mrf.mxu0
        %v830 = vadd.f32 %v607, %v829
        %v831 = vpop.f32.mrf.mxu0
        %832 = vmatprep.mubr.bf16.mxu0 0
        %833 = vmatmul.mubr.bf16.gmra.mxu0 %v689
        %v834 = vpop.f32.mrf.mxu0
        %v835 = vadd.f32 %v612, %v834
        %v836 = vpop.f32.mrf.mxu0
        %v837 = vpop.f32.mrf.mxu0
        %v838 = vadd.f32 %v615, %v837
        %v839 = vpop.f32.mrf.mxu0
        %840 = vmatprep.mubr.bf16.mxu0 0
        %841 = vmatmul.mubr.bf16.gmra.mxu0 %v692
        %v842 = vpop.f32.mrf.mxu0
        %v843 = vadd.f32 %v620, %v842
        %v844 = vpop.f32.mrf.mxu0
        %v845 = vpop.f32.mrf.mxu0
        %v846 = vadd.f32 %v623, %v845
        %v847 = vpop.f32.mrf.mxu0
        %848 = vmatprep.mubr.bf16.mxu0 0
        %849 = vmatmul.mubr.bf16.gmra.mxu0 %v695
        %v850 = vpop.f32.mrf.mxu0
        %v851 = vadd.f32 %v628, %v850
        %v852 = vpop.f32.mrf.mxu0
        %v853 = vpop.f32.mrf.mxu0
        %v854 = vadd.f32 %v631, %v853
        %v855 = vpop.f32.mrf.mxu0
        %856 = vmatprep.mubr.bf16.mxu0 0
        %857 = vmatmul.mubr.bf16.gmra.mxu0 %v698
        %v858 = vpop.f32.mrf.mxu0
        %v859 = vadd.f32 %v636, %v858
        %v860 = vpop.f32.mrf.mxu0
        %v861 = vpop.f32.mrf.mxu0
        %v862 = vadd.f32 %v639, %v861
        %v863 = vpop.f32.mrf.mxu0
        %864 = vdwg.mxu0
        %v865 = vlaneseq
        %v866 = vshrl.u32 %v865, 7
        %v867 = vsub.s32 0, %v866
        %v868 = vrot.slane %v320, %v867
        %v869 = vadd.f32 %v739, %v868
        %v870 = vadd.f32 %v742, %v868
        %v871 = vadd.f32 %v747, %v868
        %v872 = vadd.f32 %v750, %v868
        %v873 = vadd.f32 %v755, %v868
        %v874 = vadd.f32 %v758, %v868
        %v875 = vadd.f32 %v763, %v868
        %v876 = vadd.f32 %v766, %v868
        %v877 = vadd.f32 %v771, %v868
        %v878 = vadd.f32 %v774, %v868
        %v879 = vadd.f32 %v779, %v868
        %v880 = vadd.f32 %v782, %v868
        %v881 = vadd.f32 %v787, %v868
        %v882 = vadd.f32 %v790, %v868
        %v883 = vadd.f32 %v795, %v868
        %v884 = vadd.f32 %v798, %v868
        %v885 = vadd.f32 %v803, %v868
        %v886 = vadd.f32 %v806, %v868
        %v887 = vadd.f32 %v811, %v868
        %v888 = vadd.f32 %v814, %v868
        %v889 = vadd.f32 %v819, %v868
        %v890 = vadd.f32 %v822, %v868
        %v891 = vadd.f32 %v827, %v868
        %v892 = vadd.f32 %v830, %v868
        %v893 = vadd.f32 %v835, %v868
        %v894 = vadd.f32 %v838, %v868
        %v895 = vadd.f32 %v843, %v868
        %v896 = vadd.f32 %v846, %v868
        %v897 = vadd.f32 %v851, %v868
        %v898 = vadd.f32 %v854, %v868
        %v899 = vadd.f32 %v859, %v868
        %v900 = vadd.f32 %v862, %v868
        %v901 = vmax.f32 %v869, 0.0
        %v902 = vmax.f32 %v870, 0.0
        %v903 = vmax.f32 %v871, 0.0
        %v904 = vmax.f32 %v872, 0.0
        %v905 = vmax.f32 %v873, 0.0
        %v906 = vmax.f32 %v874, 0.0
        %v907 = vmax.f32 %v875, 0.0
        %v908 = vmax.f32 %v876, 0.0
        %v909 = vmax.f32 %v877, 0.0
        %v910 = vmax.f32 %v878, 0.0
        %v911 = vmax.f32 %v879, 0.0
        %v912 = vmax.f32 %v880, 0.0
        %v913 = vmax.f32 %v881, 0.0
        %v914 = vmax.f32 %v882, 0.0
        %v915 = vmax.f32 %v883, 0.0
        %v916 = vmax.f32 %v884, 0.0
        %v917 = vmax.f32 %v885, 0.0
        %v918 = vmax.f32 %v886, 0.0
        %v919 = vmax.f32 %v887, 0.0
        %v920 = vmax.f32 %v888, 0.0
        %v921 = vmax.f32 %v889, 0.0
        %v922 = vmax.f32 %v890, 0.0
        %v923 = vmax.f32 %v891, 0.0
        %v924 = vmax.f32 %v892, 0.0
        %v925 = vmax.f32 %v893, 0.0
        %v926 = vmax.f32 %v894, 0.0
        %v927 = vmax.f32 %v895, 0.0
        %v928 = vmax.f32 %v896, 0.0
        %v929 = vmax.f32 %v897, 0.0
        %v930 = vmax.f32 %v898, 0.0
        %v931 = vmax.f32 %v899, 0.0
        %v932 = vmax.f32 %v900, 0.0
        %v933 = vpack.c.bf16 %v902, %v901
        %v934 = vpack.c.bf16 %v904, %v903
        %v935 = vpack.c.bf16 %v906, %v905
        %v936 = vpack.c.bf16 %v908, %v907
        %v937 = vpack.c.bf16 %v910, %v909
        %v938 = vpack.c.bf16 %v912, %v911
        %v939 = vpack.c.bf16 %v914, %v913
        %v940 = vpack.c.bf16 %v916, %v915
        %v941 = vpack.c.bf16 %v918, %v917
        %v942 = vpack.c.bf16 %v920, %v919
        %v943 = vpack.c.bf16 %v922, %v921
        %v944 = vpack.c.bf16 %v924, %v923
        %v945 = vpack.c.bf16 %v926, %v925
        %v946 = vpack.c.bf16 %v928, %v927
        %v947 = vpack.c.bf16 %v930, %v929
        %v948 = vpack.c.bf16 %v932, %v931
        %v949 = vld [vmem:[%s4] sm:$0xf]
        %v950 = vld [vmem:[%s4 + $0x4] sm:$0xf]
        %v951 = vld [vmem:[%s4 + $0x8] sm:$0xf]
        %v952 = vld [vmem:[%s4 + $0xc] sm:$0xf]
        %v953 = vld [vmem:[%s4 + $0x10] sm:$0xf]
        %v954 = vld [vmem:[%s4 + $0x14] sm:$0xf]
        %v955 = vld [vmem:[%s4 + $0x18] sm:$0xf]
        %v956 = vld [vmem:[%s4 + $0x1c] sm:$0xf]
        %v957 = vld [vmem:[%s4 + $0x20] sm:$0xf]
        %v958 = vld [vmem:[%s4 + $0x24] sm:$0xf]
        %v959 = vld [vmem:[%s4 + $0x28] sm:$0xf]
        %v960 = vld [vmem:[%s4 + $0x2c] sm:$0xf]
        %v961 = vld [vmem:[%s4 + $0x30] sm:$0xf]
        %v962 = vld [vmem:[%s4 + $0x34] sm:$0xf]
        %v963 = vld [vmem:[%s4 + $0x38] sm:$0xf]
        %v964 = vld [vmem:[%s4 + $0x3c] sm:$0xf]
        %v965 = vlaneseq
        %v966 = vshrl.u32 %v965, 7
        %v967 = vsub.s32 0, %v966
        %v968 = vrot.slane %v321, %v967
        %v985 = vunpack.c.l.b16 %v949
        %v986 = vunpack.c.l.b16 %v950
        %v987 = vunpack.c.l.b16 %v951
        %v988 = vunpack.c.l.b16 %v952
        %v989 = vunpack.c.l.b16 %v953
        %v990 = vunpack.c.l.b16 %v954
        %v991 = vunpack.c.l.b16 %v955
        %v992 = vunpack.c.l.b16 %v956
        %v993 = vunpack.c.l.b16 %v957
        %v994 = vunpack.c.l.b16 %v958
        %v995 = vunpack.c.l.b16 %v959
        %v996 = vunpack.c.l.b16 %v960
        %v997 = vunpack.c.l.b16 %v961
        %v998 = vunpack.c.l.b16 %v962
        %v999 = vunpack.c.l.b16 %v963
        %v1000 = vunpack.c.l.b16 %v964
        %v1001 = vpack.c.b16 %v986, %v985
        %v1002 = vpack.c.b16 %v988, %v987
        %v1003 = vpack.c.b16 %v990, %v989
        %v1004 = vpack.c.b16 %v992, %v991
        %v1005 = vpack.c.b16 %v994, %v993
        %v1006 = vpack.c.b16 %v996, %v995
        %v1007 = vpack.c.b16 %v998, %v997
        %v1008 = vpack.c.b16 %v1000, %v999
        %1017 = vmatprep.subr.bf16.mxu0 0
        %1018 = vmatpush1.bf16.msra.mxu0 %v1008
        %1019 = vmatprep.subr.bf16.mxu0 0
        %1020 = vmatpush1.bf16.msra.mxu0 %v1007
        %1021 = vmatprep.subr.bf16.mxu0 0
        %1022 = vmatpush1.bf16.msra.mxu0 %v1006
        %1023 = vmatprep.subr.bf16.mxu0 0
        %1024 = vmatpush1.bf16.msra.mxu0 %v1005
        %1025 = vmatprep.subr.bf16.mxu0 0
        %1026 = vmatpush1.bf16.msra.mxu0 %v1004
        %1027 = vmatprep.subr.bf16.mxu0 0
        %1028 = vmatpush1.bf16.msra.mxu0 %v1003
        %1029 = vmatprep.subr.bf16.mxu0 0
        %1030 = vmatpush1.bf16.msra.mxu0 %v1002
        %1031 = vmatprep.subr.bf16.mxu0 0
        %1032 = vmatpush1.bf16.msra.mxu0 %v1001
        %1033 = vmatprep.subr.bf16.mxu0 0
        %1034 = vmatpush2.bf16.msra.mxu0 0
        %1035 = vmatprep.subr.bf16.mxu0 0
        %1036 = vmatpush2.bf16.msra.mxu0 0
        %1037 = vmatprep.subr.bf16.mxu0 0
        %1038 = vmatpush2.bf16.msra.mxu0 0
        %1039 = vmatprep.subr.bf16.mxu0 0
        %1040 = vmatpush2.bf16.msra.mxu0 0
        %1041 = vmatprep.subr.bf16.mxu0 0
        %1042 = vmatpush2.bf16.msra.mxu0 0
        %1043 = vmatprep.subr.bf16.mxu0 0
        %1044 = vmatpush2.bf16.msra.mxu0 0
        %1045 = vmatprep.subr.bf16.mxu0 0
        %1046 = vmatpush2.bf16.msra.mxu0 0
        %1047 = vmatprep.subr.bf16.mxu0 0
        %1048 = vmatpush2.bf16.msra.mxu0 0
        %1049 = vmatprep.mubr.bf16.mxu0 0
        %1050 = vmatmul.mubr.bf16.gmra.mxu0 %v933
        %v1051 = vpop.f32.mrf.mxu0
        %v1052 = vadd.f32 %v968, %v1051
        %v1053 = vpop.f32.mrf.mxu0
        %v1054 = vpop.f32.mrf.mxu0
        %v1055 = vadd.f32 %v968, %v1054
        %v1056 = vpop.f32.mrf.mxu0
        %1057 = vmatprep.mubr.bf16.mxu0 0
        %1058 = vmatmul.mubr.bf16.gmra.mxu0 %v934
        %v1059 = vpop.f32.mrf.mxu0
        %v1060 = vadd.f32 %v968, %v1059
        %v1061 = vpop.f32.mrf.mxu0
        %v1062 = vpop.f32.mrf.mxu0
        %v1063 = vadd.f32 %v968, %v1062
        %v1064 = vpop.f32.mrf.mxu0
        %1065 = vmatprep.mubr.bf16.mxu0 0
        %1066 = vmatmul.mubr.bf16.gmra.mxu0 %v935
        %v1067 = vpop.f32.mrf.mxu0
        %v1068 = vadd.f32 %v968, %v1067
        %v1069 = vpop.f32.mrf.mxu0
        %v1070 = vpop.f32.mrf.mxu0
        %v1071 = vadd.f32 %v968, %v1070
        %v1072 = vpop.f32.mrf.mxu0
        %1073 = vmatprep.mubr.bf16.mxu0 0
        %1074 = vmatmul.mubr.bf16.gmra.mxu0 %v936
        %v1075 = vpop.f32.mrf.mxu0
        %v1076 = vadd.f32 %v968, %v1075
        %v1077 = vpop.f32.mrf.mxu0
        %v1078 = vpop.f32.mrf.mxu0
        %v1079 = vadd.f32 %v968, %v1078
        %v1080 = vpop.f32.mrf.mxu0
        %1081 = vmatprep.mubr.bf16.mxu0 0
        %1082 = vmatmul.mubr.bf16.gmra.mxu0 %v937
        %v1083 = vpop.f32.mrf.mxu0
        %v1084 = vadd.f32 %v968, %v1083
        %v1085 = vpop.f32.mrf.mxu0
        %v1086 = vpop.f32.mrf.mxu0
        %v1087 = vadd.f32 %v968, %v1086
        %v1088 = vpop.f32.mrf.mxu0
        %1089 = vmatprep.mubr.bf16.mxu0 0
        %1090 = vmatmul.mubr.bf16.gmra.mxu0 %v938
        %v1091 = vpop.f32.mrf.mxu0
        %v1092 = vadd.f32 %v968, %v1091
        %v1093 = vpop.f32.mrf.mxu0
        %v1094 = vpop.f32.mrf.mxu0
        %v1095 = vadd.f32 %v968, %v1094
        %v1096 = vpop.f32.mrf.mxu0
        %1097 = vmatprep.mubr.bf16.mxu0 0
        %1098 = vmatmul.mubr.bf16.gmra.mxu0 %v939
        %v1099 = vpop.f32.mrf.mxu0
        %v1100 = vadd.f32 %v968, %v1099
        %v1101 = vpop.f32.mrf.mxu0
        %v1102 = vpop.f32.mrf.mxu0
        %v1103 = vadd.f32 %v968, %v1102
        %v1104 = vpop.f32.mrf.mxu0
        %1105 = vmatprep.mubr.bf16.mxu0 0
        %1106 = vmatmul.mubr.bf16.gmra.mxu0 %v940
        %v1107 = vpop.f32.mrf.mxu0
        %v1108 = vadd.f32 %v968, %v1107
        %v1109 = vpop.f32.mrf.mxu0
        %v1110 = vpop.f32.mrf.mxu0
        %v1111 = vadd.f32 %v968, %v1110
        %v1112 = vpop.f32.mrf.mxu0
        %1113 = vmatprep.mubr.bf16.mxu0 0
        %1114 = vmatmul.mubr.bf16.gmra.mxu0 %v941
        %v1115 = vpop.f32.mrf.mxu0
        %v1116 = vadd.f32 %v968, %v1115
        %v1117 = vpop.f32.mrf.mxu0
        %v1118 = vpop.f32.mrf.mxu0
        %v1119 = vadd.f32 %v968, %v1118
        %v1120 = vpop.f32.mrf.mxu0
        %1121 = vmatprep.mubr.bf16.mxu0 0
        %1122 = vmatmul.mubr.bf16.gmra.mxu0 %v942
        %v1123 = vpop.f32.mrf.mxu0
        %v1124 = vadd.f32 %v968, %v1123
        %v1125 = vpop.f32.mrf.mxu0
        %v1126 = vpop.f32.mrf.mxu0
        %v1127 = vadd.f32 %v968, %v1126
        %v1128 = vpop.f32.mrf.mxu0
        %1129 = vmatprep.mubr.bf16.mxu0 0
        %1130 = vmatmul.mubr.bf16.gmra.mxu0 %v943
        %v1131 = vpop.f32.mrf.mxu0
        %v1132 = vadd.f32 %v968, %v1131
        %v1133 = vpop.f32.mrf.mxu0
        %v1134 = vpop.f32.mrf.mxu0
        %v1135 = vadd.f32 %v968, %v1134
        %v1136 = vpop.f32.mrf.mxu0
        %1137 = vmatprep.mubr.bf16.mxu0 0
        %1138 = vmatmul.mubr.bf16.gmra.mxu0 %v944
        %v1139 = vpop.f32.mrf.mxu0
        %v1140 = vadd.f32 %v968, %v1139
        %v1141 = vpop.f32.mrf.mxu0
        %v1142 = vpop.f32.mrf.mxu0
        %v1143 = vadd.f32 %v968, %v1142
        %v1144 = vpop.f32.mrf.mxu0
        %1145 = vmatprep.mubr.bf16.mxu0 0
        %1146 = vmatmul.mubr.bf16.gmra.mxu0 %v945
        %v1147 = vpop.f32.mrf.mxu0
        %v1148 = vadd.f32 %v968, %v1147
        %v1149 = vpop.f32.mrf.mxu0
        %v1150 = vpop.f32.mrf.mxu0
        %v1151 = vadd.f32 %v968, %v1150
        %v1152 = vpop.f32.mrf.mxu0
        %1153 = vmatprep.mubr.bf16.mxu0 0
        %1154 = vmatmul.mubr.bf16.gmra.mxu0 %v946
        %v1155 = vpop.f32.mrf.mxu0
        %v1156 = vadd.f32 %v968, %v1155
        %v1157 = vpop.f32.mrf.mxu0
        %v1158 = vpop.f32.mrf.mxu0
        %v1159 = vadd.f32 %v968, %v1158
        %v1160 = vpop.f32.mrf.mxu0
        %1161 = vmatprep.mubr.bf16.mxu0 0
        %1162 = vmatmul.mubr.bf16.gmra.mxu0 %v947
        %v1163 = vpop.f32.mrf.mxu0
        %v1164 = vadd.f32 %v968, %v1163
        %v1165 = vpop.f32.mrf.mxu0
        %v1166 = vpop.f32.mrf.mxu0
        %v1167 = vadd.f32 %v968, %v1166
        %v1168 = vpop.f32.mrf.mxu0
        %1169 = vmatprep.mubr.bf16.mxu0 0
        %1170 = vmatmul.mubr.bf16.gmra.mxu0 %v948
        %v1171 = vpop.f32.mrf.mxu0
        %v1172 = vadd.f32 %v968, %v1171
        %v1173 = vpop.f32.mrf.mxu0
        %v1174 = vpop.f32.mrf.mxu0
        %v1175 = vadd.f32 %v968, %v1174
        %v1176 = vpop.f32.mrf.mxu0
        %1177 = vdwg.mxu0
        %v1178 = vmax.f32 %v1052, 0.0
        %v1179 = vmax.f32 %v1055, 0.0
        %v1180 = vmax.f32 %v1060, 0.0
        %v1181 = vmax.f32 %v1063, 0.0
        %v1182 = vmax.f32 %v1068, 0.0
        %v1183 = vmax.f32 %v1071, 0.0
        %v1184 = vmax.f32 %v1076, 0.0
        %v1185 = vmax.f32 %v1079, 0.0
        %v1186 = vmax.f32 %v1084, 0.0
        %v1187 = vmax.f32 %v1087, 0.0
        %v1188 = vmax.f32 %v1092, 0.0
        %v1189 = vmax.f32 %v1095, 0.0
        %v1190 = vmax.f32 %v1100, 0.0
        %v1191 = vmax.f32 %v1103, 0.0
        %v1192 = vmax.f32 %v1108, 0.0
        %v1193 = vmax.f32 %v1111, 0.0
        %v1194 = vmax.f32 %v1116, 0.0
        %v1195 = vmax.f32 %v1119, 0.0
        %v1196 = vmax.f32 %v1124, 0.0
        %v1197 = vmax.f32 %v1127, 0.0
        %v1198 = vmax.f32 %v1132, 0.0
        %v1199 = vmax.f32 %v1135, 0.0
        %v1200 = vmax.f32 %v1140, 0.0
        %v1201 = vmax.f32 %v1143, 0.0
        %v1202 = vmax.f32 %v1148, 0.0
        %v1203 = vmax.f32 %v1151, 0.0
        %v1204 = vmax.f32 %v1156, 0.0
        %v1205 = vmax.f32 %v1159, 0.0
        %v1206 = vmax.f32 %v1164, 0.0
        %v1207 = vmax.f32 %v1167, 0.0
        %v1208 = vmax.f32 %v1172, 0.0
        %v1209 = vmax.f32 %v1175, 0.0
        %v1210 = vpack.c.bf16 %v1179, %v1178
        %v1211 = vpack.c.bf16 %v1181, %v1180
        %v1212 = vpack.c.bf16 %v1183, %v1182
        %v1213 = vpack.c.bf16 %v1185, %v1184
        %v1214 = vpack.c.bf16 %v1187, %v1186
        %v1215 = vpack.c.bf16 %v1189, %v1188
        %v1216 = vpack.c.bf16 %v1191, %v1190
        %v1217 = vpack.c.bf16 %v1193, %v1192
        %v1218 = vpack.c.bf16 %v1195, %v1194
        %v1219 = vpack.c.bf16 %v1197, %v1196
        %v1220 = vpack.c.bf16 %v1199, %v1198
        %v1221 = vpack.c.bf16 %v1201, %v1200
        %v1222 = vpack.c.bf16 %v1203, %v1202
        %v1223 = vpack.c.bf16 %v1205, %v1204
        %v1224 = vpack.c.bf16 %v1207, %v1206
        %v1225 = vpack.c.bf16 %v1209, %v1208
        %1227 = vset.pattern.permute.xlu0 0
        %1228 = vperm.xlu0 %1227, %v324
        %v1229 = vpop.permute.xlu0 %1228
        %1231 = vmatprep.subr.bf16.mxu0 0
        %1232 = vmatpush1.bf16.xpose.msra.mxu0 %v1217
        %1233 = vmatprep.subr.bf16.mxu0 0
        %1234 = vmatpush1.bf16.xpose.msra.mxu0 %v1216
        %1235 = vmatprep.subr.bf16.mxu0 0
        %1236 = vmatpush1.bf16.xpose.msra.mxu0 %v1215
        %1237 = vmatprep.subr.bf16.mxu0 0
        %1238 = vmatpush1.bf16.xpose.msra.mxu0 %v1214
        %1239 = vmatprep.subr.bf16.mxu0 0
        %1240 = vmatpush1.bf16.xpose.msra.mxu0 %v1213
        %1241 = vmatprep.subr.bf16.mxu0 0
        %1242 = vmatpush1.bf16.xpose.msra.mxu0 %v1212
        %1243 = vmatprep.subr.bf16.mxu0 0
        %1244 = vmatpush1.bf16.xpose.msra.mxu0 %v1211
        %1245 = vmatprep.subr.bf16.mxu0 0
        %1246 = vmatpush1.bf16.xpose.msra.mxu0 %v1210
        %1247 = vmatprep.subr.bf16.mxu0 0
        %1248 = vmatpush2.bf16.xpose.msra.mxu0 %v1225
        %1249 = vmatprep.subr.bf16.mxu0 0
        %1250 = vmatpush2.bf16.xpose.msra.mxu0 %v1224
        %1251 = vmatprep.subr.bf16.mxu0 0
        %1252 = vmatpush2.bf16.xpose.msra.mxu0 %v1223
        %1253 = vmatprep.subr.bf16.mxu0 0
        %1254 = vmatpush2.bf16.xpose.msra.mxu0 %v1222
        %1255 = vmatprep.subr.bf16.mxu0 0
        %1256 = vmatpush2.bf16.xpose.msra.mxu0 %v1221
        %1257 = vmatprep.subr.bf16.mxu0 0
        %1258 = vmatpush2.bf16.xpose.msra.mxu0 %v1220
        %1259 = vmatprep.subr.bf16.mxu0 0
        %1260 = vmatpush2.bf16.xpose.msra.mxu0 %v1219
        %1261 = vmatprep.subr.bf16.mxu0 0
        %1262 = vmatpush2.bf16.xpose.msra.mxu0 %v1218
        %1263 = vmatprep.mubr.bf16.mxu0 0
        %1264 = vmatmul.mubr.bf16.gmra.mxu0 %v323
        %v1265 = vpop.f32.mrf.mxu0
        %v1266 = vadd.f32 %v1229, %v1265
        %v1267 = vpop.f32.mrf.mxu0
        %v1268 = vadd.f32 %v1229, %v1267
        %v1269 = vpop.f32.mrf.mxu0
        %v1270 = vpop.f32.mrf.mxu0
        %1271 = vdwg.mxu0
        %v1272 = vmin.f32 %v1266, 20.0
        %v1273 = vmin.f32 %v1268, 20.0
        %v1274 = vmul.f32 %v1272, 1.442695
        %v1275 = vpow.pop %v1274
        %v1276 = vmul.f32 %v1273, 1.442695
        %v1277 = vpow.pop %v1276
        %v1278 = vadd.f32 %v1275, 1.0
        %v1279 = vlog2.pop %v1278
        %v1280 = vmul.f32 %v1279, 0.6931472
        %v1281 = vmul.f32 -0.5, %v1275
        %v1282 = vadd.f32 %v1281, 1.0
        %v1283 = vmul.f32 %v1282, %v1275
        %v1284 = vand.u32 2147483647, %v1275
        %vm1285 = vcmp.lt.f32.partialorder %v1284, 0.0004427343
        %v1286 = vsel %vm1285, %v1283, %v1280
        %v1287 = vadd.f32 %v1277, 1.0
        %v1288 = vlog2.pop %v1287
        %v1289 = vmul.f32 %v1288, 0.6931472
        %v1290 = vmul.f32 -0.5, %v1277
        %v1291 = vadd.f32 %v1290, 1.0
        %v1292 = vmul.f32 %v1291, %v1277
        %v1293 = vand.u32 2147483647, %v1277
        %vm1294 = vcmp.lt.f32.partialorder %v1293, 0.0004427343
        %v1295 = vsel %vm1294, %v1292, %v1289
        %vm1296 = vcmp.gt.f32.partialorder %v1266, 20.0
        %vm1297 = vcmp.gt.f32.partialorder %v1268, 20.0
        %v1298 = vsel %vm1296, %v1266, %v1286
        %v1299 = vsel %vm1297, %v1268, %v1295
        %v1302 = vcombine.low %v1298, %v1299
        %v1304 = vunpack.c.l.s4 1966171168
        %v1305 = vunpack.c.0.s8 %v1304
        %v1306 = vlaneseq
        %v1307 = vshrl.u32 %v1306, 7
        %v1308 = vsub.s32 %v1305, %v1307
        %v1309 = vrot.slane %v1302, %v1308
        %v1311 = vunpack.c.l.s4 1966171168
        %v1312 = vunpack.c.0.s8 %v1311
        %v1313 = vlaneseq
        %v1314 = vshrl.u32 %v1313, 7
        %v1315 = vsub.s32 %v1312, %v1314
        %v1316 = vrot.slane %v1309, %v1315
        %v1318 = vlaneseq
        %vm1319 = vcmp.ge.s32.totalorder %v1318, 0
        %vm1320 = vcmp.lt.s32.totalorder %v1318, 256
        %vm1321 = vmand %vm1319, %vm1320
        %1322 = vst.msk [vmem:[%s285] sm:$0x3] %vm1321, %v1316
        %s1323 = sand.u32 %s164, 1
        %s1324 = scalar_lea.sflag [#allocation3], %s1323
        %s1325 = sand.u32 %s164, 1
        %s1326 = smul.addr %s1325, 2
        %s1327 = scalar_lea.vmem [#allocation2], %s1326
        // Predicated region
        $region45: #{tpu_custom_call.1} parent=43 // pred_check
          %p1328 = pneg %p174
        $region46: #{tpu_custom_call.1} parent=43 // pred_check_branch
          %1330 = sbr.rel (%p1328) target = $region48
        $region47: #{tpu_custom_call.1} parent=43 // pred_region
          %s1331 = smul.u32 2, %s20
          %s1332 = ssub.s32 3, %s1331
          %p1333 = scmp.lt.s32.totalorder %s1332, 2
          %s1334 = scalar_select %p1333, %s1332, 2
          %s1335 = smul.u32 16, %s1334
          %s1337 = ssub.s32 32, %s1335
          %1338 = vsyncadd %s1324, %s1337
          %p1339 = scmp.ne.s32.totalorder 0, %s1335
          %s1340 = smul.addr %s1331, 16
          %s1341 = scalar_lea.hbm %s6, %s1340
          %s1342 = sshll.u32 %s1334, 4
          %s1343 = sshll.u32 %s1327, 4
          %s1344 = int_to_ptr.vmem [resolvable:$true] %s1343
          %1346 = dma.vmem_to_hbm [thread:$0]  (%p1339), %s1344, %s1342, %s1341, %s1324
        $region48: #{tpu_custom_call.1} parent=43 // pred_fallthru
          _
      $region44: #{tpu_custom_call.1} parent=5 // pred_fallthru
        _
      %p1347 = scmp.le.s32.totalorder 2, %s15
      // Predicated region
      $region49: #{tpu_custom_call.1} parent=5 // pred_check
        %p1348 = pneg %p1347
      $region50: #{tpu_custom_call.1} parent=5 // pred_check_branch
        %1350 = sbr.rel (%p1348) target = $region52
      $region51: #{tpu_custom_call.1} parent=5 // pred_region
        %s1351 = ssub.s32 %s15, 2
        // Predicated region
        $region53: #{tpu_custom_call.1} parent=51 // pred_check
          %p1352 = pneg %p180
        $region54: #{tpu_custom_call.1} parent=51 // pred_check_branch
          %1354 = sbr.rel (%p1352) target = $region56
        $region55: #{tpu_custom_call.1} parent=51 // pred_region
          %s1355 = sand.u32 %s165, 1
          %s1356 = scalar_lea.sflag [#allocation3], %s1355
          %s1357 = sand.u32 %s165, 1
          %s1358 = smul.addr %s1357, 2
          %s1359 = scalar_lea.vmem [#allocation2], %s1358
          %1360 = dma.done %s1356, 32
        $region56: #{tpu_custom_call.1} parent=51 // pred_fallthru
          _
      $region52: #{tpu_custom_call.1} parent=5 // pred_fallthru
        _
    $region6: #{tpu_custom_call.1} parent=1 // loop_footer
      %s19 = sadd.s32 1, %s15
    $region7: #{tpu_custom_call.1} parent=1 // loop_footer_branch
      %14 = sbr.rel target = $region3
    $region8: #{tpu_custom_call.1} parent=1 // loop_exit
      _
    %1361 = vsyncpa [#allocation3], 1
    %s1362 = scalar_lea.sflag [#allocation3], 1
    %1363 = vsyncpa %s1362, 1

</llo_original>
